<compile_context>
chip_gen: v7x
topology: tpu7x:2x2x1
jax: 0.10.0
libtpu: 0.0.40
codegen_flags: <defaults>
</compile_context>

<pallas_src>
import jax
import jax.numpy as jnp
from jax.experimental import pallas as pl
from jax.experimental.pallas import tpu as pltpu

# Preferred batch tile (lane dim).  Sweepable; multiples of 128 only.
PREFERRED_TILE_B = 2048

# Packed-parameter layout inside a single (48, 128) f32 buffer (one lane tile wide):
#   cols  0:24 -> W2   (48, 24)   (out, in)
#   col  24    -> b2   (48, 1)
#   cols 25:29 -> W1   (24, 4)    (out, in), rows 0:24
#   col  29    -> b1   (24, 1),   rows 0:24
#   col  30    -> b3   (2, 1),    rows 0:2
#   cols 32:80 -> W3   (2, 48)    (out, in), rows 0:2


def policy_net_kernel(xt_ref, p_ref, o_ref):
    # xt_ref: (4, TB)    input block, batch-last (lane-dense)
    # p_ref : (48, 128)  packed params (VMEM-resident via constant index_map)
    # o_ref : (2, TB)    lane-dense output block, batch-last
    xt = xt_ref[...]                      # (4, TB)

    w2 = p_ref[:, 0:24]                   # (48, 24)
    b2 = p_ref[:, 24:25]                  # (48, 1)
    w1 = p_ref[0:24, 25:29]               # (24, 4)
    b1 = p_ref[0:24, 29:30]               # (24, 1)
    b3 = p_ref[0:2, 30:31]                # (2, 1)
    w3 = p_ref[0:2, 32:80]                # (2, 48)

    # ---- fc1 + ReLU: one padded MXU contraction (24,4)@(4,TB).  The MXU/vex slot
    # has plenty of slack; this removes the per-step column broadcasts and 4 VALU
    # FMA chains of the old outer-product path.
    h1 = jnp.dot(w1, xt, preferred_element_type=jnp.float32)        # (24, TB)
    h1 = jnp.maximum(h1 + b1, 0.0)

    # ---- fc2 + ReLU: (48,24)@(24,TB) on the MXU.
    h2 = jnp.dot(w2, h1, preferred_element_type=jnp.float32)        # (48, TB)
    h2 = jnp.maximum(h2 + b2, 0.0)

    # ---- fc_output: (2,48)@(48,TB) on the MXU -> (2,TB) directly; no cross-sublane
    # reductions, no concat copy.
    z = jnp.dot(w3, h2, preferred_element_type=jnp.float32) + b3    # (2, TB)

    # Sigmoid: exp goes to the EUP; the divide touches only the tiny (2, TB) tile.
    o_ref[...] = (1.0 / (1.0 + jnp.exp(-z))).astype(o_ref.dtype)


def pack_params(params):
    """Pack (w1,b1,w2,b2,w3,b3) [stored (in,out)/(1,out)] into one (48,128) buffer."""
    w1, b1, w2, b2, w3, b3 = params
    p = jnp.zeros((48, 128), jnp.float32)
    p = p.at[:, 0:24].set(w2.T)           # (48, 24)
    p = p.at[:, 24:25].set(b2.T)          # (48, 1)
    p = p.at[0:24, 25:29].set(w1.T)       # (24, 4)
    p = p.at[0:24, 29:30].set(b1.T)       # (24, 1)
    p = p.at[0:2, 30:31].set(b3.T)        # (2, 1)
    p = p.at[0:2, 32:80].set(w3.T)        # (2, 48)
    return p


def _round_up(n, m):
    return ((n + m - 1) // m) * m


def policy_net_forward(x, packed_params, tile_b=None):
    B = x.shape[0]

    # Adaptive batch tile: big enough to amortize per-grid-step overhead, never
    # larger than the (128-rounded) batch, and keeping the grid ~8 steps deep for
    # v7x megacore sharding / pipelining when the batch allows it.
    if tile_b is None:
        b_ceil = _round_up(B, 128)
        tile_b = min(PREFERRED_TILE_B, b_ceil)
        if b_ceil >= 8 * 128:
            tile_b = min(tile_b, _round_up((B + 7) // 8, 128))

    num_tiles = pl.cdiv(B, tile_b)
    b_pad = num_tiles * tile_b

    # Lane-dense, batch-last input; zero-pad batch to a multiple of tile_b.
    # (Kept because the module interface is (B,4)->(B,2); a feature-major
    # interface would remove these two wrapper-side HBM copies.)
    x_t = jnp.pad(x.astype(jnp.float32).T, ((0, 0), (0, b_pad - B)))   # (4, b_pad)

    # Explicit VMEM budget for the chosen tile: double-buffered x/out blocks,
    # h1/h2 intermediates (+temporaries), resident packed params, plus headroom.
    est_vmem_bytes = (
        2 * (4 + 2) * 4 * tile_b          # double-buffered (4,TB) in + (2,TB) out
        + 2 * (24 + 48) * 4 * tile_b      # h1/h2 + broadcast/relayout temporaries
        + 2 * packed_params.size * 4      # packed params (double-buffered worst case)
    )
    vmem_limit = max(2 * est_vmem_bytes + (2 << 20), 32 << 20)

    out_t = pl.pallas_call(
        policy_net_kernel,
        out_shape=jax.ShapeDtypeStruct((2, b_pad), jnp.float32),
        grid_spec=pl.GridSpec(
            grid=(num_tiles,),
            in_specs=[
                pl.BlockSpec((4, tile_b), lambda i: (0, i)),            # x tile
                pl.BlockSpec(packed_params.shape, lambda i: (0, 0)),    # params, resident
            ],
            out_specs=pl.BlockSpec((2, tile_b), lambda i: (0, i)),
        ),
        compiler_params=pltpu.CompilerParams(
            # TODO(synk): on v7x, sweep pltpu.CORE_PARALLEL here for 2-TC sharding.
            dimension_semantics=("parallel",),
            vmem_limit_bytes=vmem_limit,
        ),
        cost_estimate=pl.CostEstimate(
            flops=2 * b_pad * (4 * 24 + 24 * 48 + 48 * 2),
            transcendentals=2 * b_pad,
            bytes_accessed=4 * (4 * b_pad + 2 * b_pad + packed_params.size),
        ),
    )(x_t, packed_params)

    return out_t[:, :B].T                 # (B, 2)


def init_params(key):
    """Deterministic init mimicking nn.Linear default: U(-1/sqrt(fan_in), 1/sqrt(fan_in)).
    Weights stored as (in_dim, out_dim); biases as (1, out_dim)."""
    dims = [(4, 24), (24, 48), (48, 2)]
    params = []
    for (fan_in, fan_out) in dims:
        key, kw, kb = jax.random.split(key, 3)
        bound = 1.0 / (fan_in ** 0.5)
        w = jax.random.uniform(kw, (fan_in, fan_out), jnp.float32, -bound, bound)
        b = jax.random.uniform(kb, (1, fan_out), jnp.float32, -bound, bound)
        params += [w, b]
    return tuple(params)


def reference_forward(x, params):
    w1, b1, w2, b2, w3, b3 = params
    h1 = jnp.maximum(x @ w1 + b1, 0.0)
    h2 = jnp.maximum(h1 @ w2 + b2, 0.0)
    return jax.nn.sigmoid(h2 @ w3 + b3)


if __name__ == "__main__":
    key = jax.random.PRNGKey(0)
    key, kx1, kx2 = jax.random.split(key, 3)
    params = init_params(key)
    packed = pack_params(params)

    # Small primary check (single grid step).
    batch = 8
    x = jax.random.normal(kx1, (batch, 4), dtype=jnp.float32)
    out = jax.block_until_ready(policy_net_forward(x, packed))
    ref = reference_forward(x, params)
    assert out.shape == (batch, 2)
    assert jnp.allclose(out, ref, atol=1e-5, rtol=1e-5), "mismatch vs reference (B=8)"

    # Multi-tile + batch-padding check (3 grid steps with an explicit small tile).
    batch2 = 300
    x2 = jax.random.normal(kx2, (batch2, 4), dtype=jnp.float32)
    out2 = jax.block_until_ready(policy_net_forward(x2, packed, tile_b=128))
    ref2 = reference_forward(x2, params)
    assert out2.shape == (batch2, 2)
    assert jnp.allclose(out2, ref2, atol=1e-5, rtol=1e-5), "mismatch vs reference (B=300)"

    print("KERNEL_OK")
</pallas_src>

<mosaic_0001>
module attributes {stable_mosaic.version = 11 : i64} {
  func.func @policy_net_kernel(%arg0: i32, %arg1: memref<4x128xf32, #tpu.memory_space<vmem>>, %arg2: memref<48x128xf32, #tpu.memory_space<vmem>>, %arg3: memref<2x128xf32, #tpu.memory_space<vmem>>) attributes {dimension_semantics = [#tpu.dimension_semantics<parallel>], iteration_bounds = array<i64: 1>, scalar_prefetch = 0 : i64, scratch_operands = 0 : i64, tpu.core_type = #tpu.core_type<tc>, window_params = [{transform_indices = @transform_0, window_bounds = array<i64: 4, 128>}, {pipeline_mode = #tpu.pipeline_mode<synchronous>, transform_indices = @transform_1, window_bounds = array<i64: 48, 128>}, {transform_indices = @transform_2, window_bounds = array<i64: 2, 128>}]} {
    %c0 = arith.constant 0 : index
    %c0_0 = arith.constant 0 : index
    %0 = vector.load %arg1[%c0, %c0_0] : memref<4x128xf32, #tpu.memory_space<vmem>>, vector<4x128xf32>
    %c0_1 = arith.constant 0 : index
    %c0_2 = arith.constant 0 : index
    %1 = vector.load %arg2[%c0_1, %c0_2] : memref<48x128xf32, #tpu.memory_space<vmem>>, vector<48x24xf32>
    %c0_3 = arith.constant 0 : index
    %c24 = arith.constant 24 : index
    %2 = vector.load %arg2[%c0_3, %c24] : memref<48x128xf32, #tpu.memory_space<vmem>>, vector<48x1xf32>
    %c0_4 = arith.constant 0 : index
    %c25 = arith.constant 25 : index
    %3 = vector.load %arg2[%c0_4, %c25] : memref<48x128xf32, #tpu.memory_space<vmem>>, vector<24x4xf32>
    %c0_5 = arith.constant 0 : index
    %c29 = arith.constant 29 : index
    %4 = vector.load %arg2[%c0_5, %c29] : memref<48x128xf32, #tpu.memory_space<vmem>>, vector<24x1xf32>
    %c0_6 = arith.constant 0 : index
    %c30 = arith.constant 30 : index
    %5 = vector.load %arg2[%c0_6, %c30] : memref<48x128xf32, #tpu.memory_space<vmem>>, vector<2x1xf32>
    %c0_7 = arith.constant 0 : index
    %c32 = arith.constant 32 : index
    %6 = vector.load %arg2[%c0_7, %c32] : memref<48x128xf32, #tpu.memory_space<vmem>>, vector<2x48xf32>
    %cst = arith.constant dense<0.000000e+00> : vector<24x128xf32>
    %7 = tpu.matmul %3, %0, %cst {dimension_numbers = #tpu.dot_dimension_numbers<[1], [0], [0], [1], [0, 0, 1, 1], [], []>} : vector<24x4xf32>, vector<4x128xf32>, vector<24x128xf32> -> vector<24x128xf32>
    %8 = vector.broadcast %4 : vector<24x1xf32> to vector<24x128xf32>
    %9 = arith.addf %7, %8 : vector<24x128xf32>
    %cst_8 = arith.constant 0.000000e+00 : f32
    %10 = vector.broadcast %cst_8 : f32 to vector<24x128xf32>
    %11 = arith.maximumf %9, %10 : vector<24x128xf32>
    %cst_9 = arith.constant dense<0.000000e+00> : vector<48x128xf32>
    %12 = tpu.matmul %1, %11, %cst_9 {dimension_numbers = #tpu.dot_dimension_numbers<[1], [0], [0], [1], [0, 0, 1, 1], [], []>} : vector<48x24xf32>, vector<24x128xf32>, vector<48x128xf32> -> vector<48x128xf32>
    %13 = vector.broadcast %2 : vector<48x1xf32> to vector<48x128xf32>
    %14 = arith.addf %12, %13 : vector<48x128xf32>
    %cst_10 = arith.constant 0.000000e+00 : f32
    %15 = vector.broadcast %cst_10 : f32 to vector<48x128xf32>
    %16 = arith.maximumf %14, %15 : vector<48x128xf32>
    %cst_11 = arith.constant dense<0.000000e+00> : vector<2x128xf32>
    %17 = tpu.matmul %6, %16, %cst_11 {dimension_numbers = #tpu.dot_dimension_numbers<[1], [0], [0], [1], [0, 0, 1, 1], [], []>} : vector<2x48xf32>, vector<48x128xf32>, vector<2x128xf32> -> vector<2x128xf32>
    %18 = vector.broadcast %5 : vector<2x1xf32> to vector<2x128xf32>
    %19 = arith.addf %17, %18 : vector<2x128xf32>
    %cst_12 = arith.constant 0.000000e+00 : f32
    %20 = vector.broadcast %cst_12 : f32 to vector<2x128xf32>
    %21 = arith.subf %20, %19 : vector<2x128xf32>
    %22 = math.exp %21 : vector<2x128xf32>
    %cst_13 = arith.constant 1.000000e+00 : f32
    %23 = vector.broadcast %cst_13 : f32 to vector<2x128xf32>
    %24 = arith.addf %23, %22 : vector<2x128xf32>
    %cst_14 = arith.constant 1.000000e+00 : f32
    %25 = vector.broadcast %cst_14 : f32 to vector<2x128xf32>
    %26 = arith.divf %25, %24 : vector<2x128xf32>
    %c0_15 = arith.constant 0 : index
    %c0_16 = arith.constant 0 : index
    %27 = vector.load %arg3[%c0_15, %c0_16] : memref<2x128xf32, #tpu.memory_space<vmem>>, vector<2x128xf32>
    tpu.vector_store %arg3[%c0_15, %c0_16], %26 {strides = array<i32>} : memref<2x128xf32, #tpu.memory_space<vmem>>, vector<2x128xf32>,
    return
  }
  func.func @transform_0(%arg0: i32) -> (i32, i32) {
    %c0_i32 = arith.constant 0 : i32
    %c0_i32_0 = arith.constant 0 : i32
    return %c0_i32, %arg0 : i32, i32
  }
  func.func @transform_1(%arg0: i32) -> (i32, i32) {
    %c0_i32 = arith.constant 0 : i32
    %c0_i32_0 = arith.constant 0 : i32
    %c0_i32_1 = arith.constant 0 : i32
    return %c0_i32, %c0_i32_0 : i32, i32
  }
  func.func @transform_2(%arg0: i32) -> (i32, i32) {
    %c0_i32 = arith.constant 0 : i32
    %c0_i32_0 = arith.constant 0 : i32
    return %c0_i32, %arg0 : i32, i32
  }
}

</mosaic_0001>

<llo_original>
// kernel: tpu_custom_call.1
$region0: #{tpu_custom_call.1}
  #allocation0 [shape = 'u32[]', space=smem, size = 0x4, offset = 0x4, fixed_abs, tag = 'smem constant byte address 0x4 - core index']
  #allocation1 [shape = 'u32[144,128]{1,0:T(1,128)}', space=vmem, size = 0x12000, scoped, tag = 'internal scratch']
  %s0 = inlined_call_operand.hbm [shape: f32[4,128], index: 0, kind: input, shape index: {}]
  %s1 = inlined_call_operand.hbm [shape: f32[48,128], index: 1, kind: input, shape index: {}]
  %s2 = inlined_call_operand.hbm [shape: f32[2,128], index: 2, kind: output, shape index: {}]
  %s3 = sld [smem:[#allocation0]]
  $region26: #{tpu_custom_call.1} parent=0
    _
  %s5 = ssub.s32 1, %s3
  %s6 = scalar_select 0, %s5, %s3
  $region1: #{tpu_custom_call.1} parent=0
    #allocation2 [shape = 'u8[2048]{0}', space=vmem, size = 0x800, scoped, tag = 'input window, operand 0, single buffered']
    #allocation3 [shape = 's32[1]{0}', space=sflag, size = 0x4, scoped, tag = 'scoped memory for tpu_custom_call.1']
    #allocation4 [shape = 's32[1]{0}', space=sflag, size = 0x4, scoped, tag = 'scoped memory for tpu_custom_call.1']
    #allocation5 [shape = 'u8[24576]{0}', space=vmem, size = 0x6000, scoped, tag = 'input window, operand 1, single buffered']
    #allocation6 [shape = 's32[1]{0}', space=sflag, size = 0x4, scoped, tag = 'scoped memory for tpu_custom_call.1']
    #allocation7 [shape = 'u8[1024]{0}', space=vmem, size = 0x400, scoped, tag = 'output window, operand 0, single buffered']
    %7 = vsyncpa [#allocation3], 0
    %8 = vsyncpa [#allocation6], 0
    %9 = vsyncpa [#allocation4], 0
    // Predicated region
    $region2: #{tpu_custom_call.1} parent=1 // pred_check
      _
    $region3: #{tpu_custom_call.1} parent=1 // pred_check_branch
      %11 = sbr.rel (0) target = $region5
    $region4: #{tpu_custom_call.1} parent=1 // pred_region
      %s13 = ssub.s32 64, 64
      %14 = vsyncadd [#allocation3], %s13
      %s16 = sshll.u32 [#allocation2], 4
      %s17 = int_to_ptr.vmem [resolvable:$true] %s16
      %19 = dma.hbm_to_vmem [thread:$0]  %s0, 64, %s17, [#allocation3]
    $region5: #{tpu_custom_call.1} parent=1 // pred_fallthru
      _
    // Predicated region
    $region6: #{tpu_custom_call.1} parent=1 // pred_check
      _
    $region7: #{tpu_custom_call.1} parent=1 // pred_check_branch
      %21 = sbr.rel (0) target = $region9
    $region8: #{tpu_custom_call.1} parent=1 // pred_region
      %s23 = ssub.s32 768, 768
      %24 = vsyncadd [#allocation6], %s23
      %s25 = sshll.u32 [#allocation5], 4
      %s26 = int_to_ptr.vmem [resolvable:$true] %s25
      %31 = dma.hbm_to_vmem [thread:$0]  %s1, 768, %s26, [#allocation6], 128, 128, 8
    $region9: #{tpu_custom_call.1} parent=1 // pred_fallthru
      _
    // Predicated region
    $region10: #{tpu_custom_call.1} parent=1 // pred_check
      _
    $region11: #{tpu_custom_call.1} parent=1 // pred_check_branch
      %33 = sbr.rel (0) target = $region13
    $region12: #{tpu_custom_call.1} parent=1 // pred_region
      %34 = dma.done [#allocation3], 64
    $region13: #{tpu_custom_call.1} parent=1 // pred_fallthru
      _
    // Predicated region
    $region14: #{tpu_custom_call.1} parent=1 // pred_check
      _
    $region15: #{tpu_custom_call.1} parent=1 // pred_check_branch
      %36 = sbr.rel (0) target = $region17
    $region16: #{tpu_custom_call.1} parent=1 // pred_region
      %37 = dma.done [#allocation6], 768
    $region17: #{tpu_custom_call.1} parent=1 // pred_fallthru
      _
    %v38 = vld [vmem:[#allocation2] sm:$0xf]
    %v39 = vld [vmem:[#allocation5] sm:$0xff]
    %v40 = vld [vmem:[#allocation5 + $0x8] sm:$0xff]
    %v41 = vld [vmem:[#allocation5 + $0x10] sm:$0xff]
    %v42 = vld [vmem:[#allocation5 + $0x18] sm:$0xff]
    %v43 = vld [vmem:[#allocation5 + $0x20] sm:$0xff]
    %v44 = vld [vmem:[#allocation5 + $0x28] sm:$0xff]
    %v45 = vld [vmem:[#allocation5] sm:$0xff]
    %v46 = vld [vmem:[#allocation5 + $0x8] sm:$0xff]
    %v47 = vld [vmem:[#allocation5 + $0x10] sm:$0xff]
    %v48 = vld [vmem:[#allocation5] sm:$0x3]
    %50 = vset.pattern.permute.xlu0 29
    %51 = vperm.xlu0 %50, %v45
    %v52 = vpop.permute.xlu0 %51
    %55 = vset.pattern.permute.xlu0 29
    %56 = vperm.xlu0 %55, %v46
    %v57 = vpop.permute.xlu0 %56
    %60 = vset.pattern.permute.xlu0 29
    %61 = vperm.xlu0 %60, %v47
    %v62 = vpop.permute.xlu0 %61
    %64 = vrot.lane.b32.xlu0 %v45, 103
    %v65 = vpop.permute.xlu0 %64
    %66 = vrot.lane.b32.xlu0 %v46, 103
    %v67 = vpop.permute.xlu0 %66
    %68 = vrot.lane.b32.xlu0 %v47, 103
    %v69 = vpop.permute.xlu0 %68
    %vm70 = vcmask 31744
    %v71 = vsel %vm70, %v65, 0
    %v73 = vsel %vm70, %v67, 0
    %v75 = vsel %vm70, %v69, 0
    %vm77 = vcmask 1043456
    %v79 = vsel %vm77, %v38, 0
    %81 = vmatprep.subr.mxu0 0.0
    %82 = vmatpush1.msra.mxu0 %v79
    %83 = vmatprep.subr.mxu0 0.0
    %84 = vmatpush1.msra.mxu0 0.0
    %85 = vmatprep.subr.mxu0 0.0
    %86 = vmatpush1.msra.mxu0 0.0
    %87 = vmatprep.subr.mxu0 0.0
    %88 = vmatpush1.msra.mxu0 0.0
    %89 = vmatprep.subr.mxu0 0.0
    %90 = vmatpush1.msra.mxu0 0.0
    %91 = vmatprep.subr.mxu0 0.0
    %92 = vmatpush1.msra.mxu0 0.0
    %93 = vmatprep.subr.mxu0 0.0
    %94 = vmatpush1.msra.mxu0 0.0
    %95 = vmatprep.subr.mxu0 0.0
    %96 = vmatpush1.msra.mxu0 0.0
    %97 = vmatprep.subr.mxu0 0.0
    %98 = vmatpush1.msra.mxu0 0.0
    %99 = vmatprep.subr.mxu0 0.0
    %100 = vmatpush1.msra.mxu0 0.0
    %101 = vmatprep.subr.mxu0 0.0
    %102 = vmatpush1.msra.mxu0 0.0
    %103 = vmatprep.subr.mxu0 0.0
    %104 = vmatpush1.msra.mxu0 0.0
    %105 = vmatprep.subr.mxu0 0.0
    %106 = vmatpush1.msra.mxu0 0.0
    %107 = vmatprep.subr.mxu0 0.0
    %108 = vmatpush1.msra.mxu0 0.0
    %109 = vmatprep.subr.mxu0 0.0
    %110 = vmatpush1.msra.mxu0 0.0
    %111 = vmatprep.subr.mxu0 0.0
    %112 = vmatpush1.msra.mxu0 0.0
    %113 = vmatprep.subr.mxu0 0.0
    %114 = vmatpush1.msra.mxu0 0.0
    %115 = vmatprep.subr.mxu0 0.0
    %116 = vmatpush1.msra.mxu0 0.0
    %117 = vmatprep.subr.mxu0 0.0
    %118 = vmatpush1.msra.mxu0 0.0
    %119 = vmatprep.subr.mxu0 0.0
    %120 = vmatpush1.msra.mxu0 0.0
    %121 = vmatprep.subr.mxu0 0.0
    %122 = vmatpush1.msra.mxu0 0.0
    %123 = vmatprep.subr.mxu0 0.0
    %124 = vmatpush1.msra.mxu0 0.0
    %125 = vmatprep.subr.mxu0 0.0
    %126 = vmatpush1.msra.mxu0 0.0
    %127 = vmatprep.subr.mxu0 0.0
    %128 = vmatpush1.msra.mxu0 0.0
    %129 = vmatprep.subr.mxu0 0.0
    %130 = vmatpush1.msra.mxu0 0.0
    %131 = vmatprep.subr.mxu0 0.0
    %132 = vmatpush1.msra.mxu0 0.0
    %133 = vmatprep.subr.mxu0 0.0
    %134 = vmatpush1.msra.mxu0 0.0
    %135 = vmatprep.subr.mxu0 0.0
    %136 = vmatpush1.msra.mxu0 0.0
    %137 = vmatprep.subr.mxu0 0.0
    %138 = vmatpush1.msra.mxu0 0.0
    %139 = vmatprep.subr.mxu0 0.0
    %140 = vmatpush1.msra.mxu0 0.0
    %141 = vmatprep.subr.mxu0 0.0
    %142 = vmatpush1.msra.mxu0 0.0
    %143 = vmatprep.subr.mxu0 0.0
    %144 = vmatpush1.msra.mxu0 0.0
    %145 = vmatprep.mubr.f32.mxu0 0.0
    %146 = vmatmul.mubr.f32.gmra.mrb[0].mxu0 %v71
    %v147 = vpop.f32.mrb[0].mxu0
    %v148 = vadd.f32 %v52, %v147
    %v149 = vpop.f32.mrb[0].mxu0
    %150 = vmatprep.mubr.f32.mxu0 0.0
    %151 = vmatmul.mubr.f32.gmra.mrb[0].mxu0 %v73
    %v152 = vpop.f32.mrb[0].mxu0
    %v153 = vadd.f32 %v57, %v152
    %v154 = vpop.f32.mrb[0].mxu0
    %155 = vmatprep.mubr.f32.mxu0 0.0
    %156 = vmatmul.mubr.f32.gmra.mrb[0].mxu0 %v75
    %v157 = vpop.f32.mrb[0].mxu0
    %v158 = vadd.f32 %v62, %v157
    %v159 = vpop.f32.mrb[0].mxu0
    %160 = vdwg.mxu0
    %v161 = vmax.f32 %v148, 0.0
    %v162 = vmax.f32 %v153, 0.0
    %v163 = vmax.f32 %v158, 0.0
    %165 = vset.pattern.permute.xlu0 24
    %166 = vperm.xlu0 %165, %v39
    %v167 = vpop.permute.xlu0 %166
    %170 = vset.pattern.permute.xlu0 24
    %171 = vperm.xlu0 %170, %v40
    %v172 = vpop.permute.xlu0 %171
    %175 = vset.pattern.permute.xlu0 24
    %176 = vperm.xlu0 %175, %v41
    %v177 = vpop.permute.xlu0 %176
    %180 = vset.pattern.permute.xlu0 24
    %181 = vperm.xlu0 %180, %v42
    %v182 = vpop.permute.xlu0 %181
    %185 = vset.pattern.permute.xlu0 24
    %186 = vperm.xlu0 %185, %v43
    %v187 = vpop.permute.xlu0 %186
    %190 = vset.pattern.permute.xlu0 24
    %191 = vperm.xlu0 %190, %v44
    %v192 = vpop.permute.xlu0 %191
    %vm194 = vcmask 195584
    %v195 = vsel %vm194, %v39, 0
    %v197 = vsel %vm194, %v40, 0
    %v199 = vsel %vm194, %v41, 0
    %v201 = vsel %vm194, %v42, 0
    %v203 = vsel %vm194, %v43, 0
    %v205 = vsel %vm194, %v44, 0
    %207 = vmatprep.subr.mxu0 0.0
    %208 = vmatpush1.msra.mxu0 %v161
    %209 = vmatprep.subr.mxu0 0.0
    %210 = vmatpush1.msra.mxu0 %v162
    %211 = vmatprep.subr.mxu0 0.0
    %212 = vmatpush1.msra.mxu0 %v163
    %213 = vmatprep.subr.mxu0 0.0
    %214 = vmatpush1.msra.mxu0 0.0
    %215 = vmatprep.subr.mxu0 0.0
    %216 = vmatpush1.msra.mxu0 0.0
    %217 = vmatprep.subr.mxu0 0.0
    %218 = vmatpush1.msra.mxu0 0.0
    %219 = vmatprep.subr.mxu0 0.0
    %220 = vmatpush1.msra.mxu0 0.0
    %221 = vmatprep.subr.mxu0 0.0
    %222 = vmatpush1.msra.mxu0 0.0
    %223 = vmatprep.subr.mxu0 0.0
    %224 = vmatpush1.msra.mxu0 0.0
    %225 = vmatprep.subr.mxu0 0.0
    %226 = vmatpush1.msra.mxu0 0.0
    %227 = vmatprep.subr.mxu0 0.0
    %228 = vmatpush1.msra.mxu0 0.0
    %229 = vmatprep.subr.mxu0 0.0
    %230 = vmatpush1.msra.mxu0 0.0
    %231 = vmatprep.subr.mxu0 0.0
    %232 = vmatpush1.msra.mxu0 0.0
    %233 = vmatprep.subr.mxu0 0.0
    %234 = vmatpush1.msra.mxu0 0.0
    %235 = vmatprep.subr.mxu0 0.0
    %236 = vmatpush1.msra.mxu0 0.0
    %237 = vmatprep.subr.mxu0 0.0
    %238 = vmatpush1.msra.mxu0 0.0
    %239 = vmatprep.subr.mxu0 0.0
    %240 = vmatpush1.msra.mxu0 0.0
    %241 = vmatprep.subr.mxu0 0.0
    %242 = vmatpush1.msra.mxu0 0.0
    %243 = vmatprep.subr.mxu0 0.0
    %244 = vmatpush1.msra.mxu0 0.0
    %245 = vmatprep.subr.mxu0 0.0
    %246 = vmatpush1.msra.mxu0 0.0
    %247 = vmatprep.subr.mxu0 0.0
    %248 = vmatpush1.msra.mxu0 0.0
    %249 = vmatprep.subr.mxu0 0.0
    %250 = vmatpush1.msra.mxu0 0.0
    %251 = vmatprep.subr.mxu0 0.0
    %252 = vmatpush1.msra.mxu0 0.0
    %253 = vmatprep.subr.mxu0 0.0
    %254 = vmatpush1.msra.mxu0 0.0
    %255 = vmatprep.subr.mxu0 0.0
    %256 = vmatpush1.msra.mxu0 0.0
    %257 = vmatprep.subr.mxu0 0.0
    %258 = vmatpush1.msra.mxu0 0.0
    %259 = vmatprep.subr.mxu0 0.0
    %260 = vmatpush1.msra.mxu0 0.0
    %261 = vmatprep.subr.mxu0 0.0
    %262 = vmatpush1.msra.mxu0 0.0
    %263 = vmatprep.subr.mxu0 0.0
    %264 = vmatpush1.msra.mxu0 0.0
    %265 = vmatprep.subr.mxu0 0.0
    %266 = vmatpush1.msra.mxu0 0.0
    %267 = vmatprep.subr.mxu0 0.0
    %268 = vmatpush1.msra.mxu0 0.0
    %269 = vmatprep.subr.mxu0 0.0
    %270 = vmatpush1.msra.mxu0 0.0
    %271 = vmatprep.mubr.f32.mxu0 0.0
    %272 = vmatmul.mubr.f32.gmra.mrb[0].mxu0 %v195
    %v273 = vpop.f32.mrb[0].mxu0
    %v274 = vadd.f32 %v167, %v273
    %v275 = vpop.f32.mrb[0].mxu0
    %276 = vmatprep.mubr.f32.mxu0 0.0
    %277 = vmatmul.mubr.f32.gmra.mrb[0].mxu0 %v197
    %v278 = vpop.f32.mrb[0].mxu0
    %v279 = vadd.f32 %v172, %v278
    %v280 = vpop.f32.mrb[0].mxu0
    %281 = vmatprep.mubr.f32.mxu0 0.0
    %282 = vmatmul.mubr.f32.gmra.mrb[0].mxu0 %v199
    %v283 = vpop.f32.mrb[0].mxu0
    %v284 = vadd.f32 %v177, %v283
    %v285 = vpop.f32.mrb[0].mxu0
    %286 = vmatprep.mubr.f32.mxu0 0.0
    %287 = vmatmul.mubr.f32.gmra.mrb[0].mxu0 %v201
    %v288 = vpop.f32.mrb[0].mxu0
    %v289 = vadd.f32 %v182, %v288
    %v290 = vpop.f32.mrb[0].mxu0
    %291 = vmatprep.mubr.f32.mxu0 0.0
    %292 = vmatmul.mubr.f32.gmra.mrb[0].mxu0 %v203
    %v293 = vpop.f32.mrb[0].mxu0
    %v294 = vadd.f32 %v187, %v293
    %v295 = vpop.f32.mrb[0].mxu0
    %296 = vmatprep.mubr.f32.mxu0 0.0
    %297 = vmatmul.mubr.f32.gmra.mrb[0].mxu0 %v205
    %v298 = vpop.f32.mrb[0].mxu0
    %v299 = vadd.f32 %v192, %v298
    %v300 = vpop.f32.mrb[0].mxu0
    %301 = vdwg.mxu0
    %v302 = vmax.f32 %v274, 0.0
    %v303 = vmax.f32 %v279, 0.0
    %v304 = vmax.f32 %v284, 0.0
    %v305 = vmax.f32 %v289, 0.0
    %v306 = vmax.f32 %v294, 0.0
    %v307 = vmax.f32 %v299, 0.0
    %309 = vset.pattern.permute.xlu0 30
    %310 = vperm.xlu0 %309, %v48
    %v311 = vpop.permute.xlu0 %310
    %313 = vrot.lane.b32.xlu0 %v48, 96
    %v314 = vpop.permute.xlu0 %313
    %vm315 = vcmask 392192
    %v316 = vsel %vm315, %v314, 0
    %318 = vmatprep.subr.mxu0 0.0
    %319 = vmatpush1.msra.mxu0 %v302
    %320 = vmatprep.subr.mxu0 0.0
    %321 = vmatpush1.msra.mxu0 %v303
    %322 = vmatprep.subr.mxu0 0.0
    %323 = vmatpush1.msra.mxu0 %v304
    %324 = vmatprep.subr.mxu0 0.0
    %325 = vmatpush1.msra.mxu0 %v305
    %326 = vmatprep.subr.mxu0 0.0
    %327 = vmatpush1.msra.mxu0 %v306
    %328 = vmatprep.subr.mxu0 0.0
    %329 = vmatpush1.msra.mxu0 %v307
    %330 = vmatprep.subr.mxu0 0.0
    %331 = vmatpush1.msra.mxu0 0.0
    %332 = vmatprep.subr.mxu0 0.0
    %333 = vmatpush1.msra.mxu0 0.0
    %334 = vmatprep.subr.mxu0 0.0
    %335 = vmatpush1.msra.mxu0 0.0
    %336 = vmatprep.subr.mxu0 0.0
    %337 = vmatpush1.msra.mxu0 0.0
    %338 = vmatprep.subr.mxu0 0.0
    %339 = vmatpush1.msra.mxu0 0.0
    %340 = vmatprep.subr.mxu0 0.0
    %341 = vmatpush1.msra.mxu0 0.0
    %342 = vmatprep.subr.mxu0 0.0
    %343 = vmatpush1.msra.mxu0 0.0
    %344 = vmatprep.subr.mxu0 0.0
    %345 = vmatpush1.msra.mxu0 0.0
    %346 = vmatprep.subr.mxu0 0.0
    %347 = vmatpush1.msra.mxu0 0.0
    %348 = vmatprep.subr.mxu0 0.0
    %349 = vmatpush1.msra.mxu0 0.0
    %350 = vmatprep.subr.mxu0 0.0
    %351 = vmatpush1.msra.mxu0 0.0
    %352 = vmatprep.subr.mxu0 0.0
    %353 = vmatpush1.msra.mxu0 0.0
    %354 = vmatprep.subr.mxu0 0.0
    %355 = vmatpush1.msra.mxu0 0.0
    %356 = vmatprep.subr.mxu0 0.0
    %357 = vmatpush1.msra.mxu0 0.0
    %358 = vmatprep.subr.mxu0 0.0
    %359 = vmatpush1.msra.mxu0 0.0
    %360 = vmatprep.subr.mxu0 0.0
    %361 = vmatpush1.msra.mxu0 0.0
    %362 = vmatprep.subr.mxu0 0.0
    %363 = vmatpush1.msra.mxu0 0.0
    %364 = vmatprep.subr.mxu0 0.0
    %365 = vmatpush1.msra.mxu0 0.0
    %366 = vmatprep.subr.mxu0 0.0
    %367 = vmatpush1.msra.mxu0 0.0
    %368 = vmatprep.subr.mxu0 0.0
    %369 = vmatpush1.msra.mxu0 0.0
    %370 = vmatprep.subr.mxu0 0.0
    %371 = vmatpush1.msra.mxu0 0.0
    %372 = vmatprep.subr.mxu0 0.0
    %373 = vmatpush1.msra.mxu0 0.0
    %374 = vmatprep.subr.mxu0 0.0
    %375 = vmatpush1.msra.mxu0 0.0
    %376 = vmatprep.subr.mxu0 0.0
    %377 = vmatpush1.msra.mxu0 0.0
    %378 = vmatprep.subr.mxu0 0.0
    %379 = vmatpush1.msra.mxu0 0.0
    %380 = vmatprep.subr.mxu0 0.0
    %381 = vmatpush1.msra.mxu0 0.0
    %382 = vmatprep.mubr.f32.mxu0 0.0
    %383 = vmatmul.mubr.f32.gmra.mrb[0].mxu0 %v316
    %v384 = vpop.f32.mrb[0].mxu0
    %v385 = vadd.f32 %v311, %v384
    %v386 = vpop.f32.mrb[0].mxu0
    %387 = vdwg.mxu0
    %v388 = vsub.f32 0.0, %v385
    %v389 = vmul.f32 %v388, 1.442695
    %v390 = vpow.pop %v389
    %v391 = vadd.f32 %v390, 1.0
    %v392 = vrcp.pop %v391
    %v393 = vmul.f32 1.0, %v392
    %394 = vst [vmem:[#allocation7] sm:$0x3] %v393
    // Predicated region
    $region18: #{tpu_custom_call.1} parent=1 // pred_check
      _
    $region19: #{tpu_custom_call.1} parent=1 // pred_check_branch
      %396 = sbr.rel (0) target = $region21
    $region20: #{tpu_custom_call.1} parent=1 // pred_region
      %s398 = ssub.s32 32, 32
      %399 = vsyncadd [#allocation4], %s398
      %s401 = sshll.u32 [#allocation7], 4
      %s402 = int_to_ptr.vmem [resolvable:$true] %s401
      %404 = dma.vmem_to_hbm [thread:$0]  %s402, 32, %s2, [#allocation4]
    $region21: #{tpu_custom_call.1} parent=1 // pred_fallthru
      _
    // Predicated region
    $region22: #{tpu_custom_call.1} parent=1 // pred_check
      _
    $region23: #{tpu_custom_call.1} parent=1 // pred_check_branch
      %406 = sbr.rel (0) target = $region25
    $region24: #{tpu_custom_call.1} parent=1 // pred_region
      %407 = dma.done [#allocation4], 32
    $region25: #{tpu_custom_call.1} parent=1 // pred_fallthru
      _
    %408 = vsyncpa [#allocation3], 1
    %409 = vsyncpa [#allocation6], 1
    %410 = vsyncpa [#allocation4], 1

</llo_original>
